<compile_context>
chip_gen: v6e
topology: v6e:2x2x1
jax: 0.10.0
libtpu: 0.0.40
codegen_flags: <defaults>
</compile_context>

<pallas_src>
import functools

import jax
import jax.numpy as jnp
from jax.experimental import pallas as pl
from jax.experimental.pallas import tpu as pltpu


# ----------------------------- helpers -----------------------------

def _round_up(v, m):
    return ((v + m - 1) // m) * m


def _choose_seqs_per_tile(B, T, target_rows=256):
    """Pick s | B so that tm = s*T is a multiple of 8 and tm ~ target_rows."""
    best = None
    for s in range(1, B + 1):
        if B % s:
            continue
        tm = s * T
        if (tm % 8 != 0) and (tm != B * T):
            continue                     # would violate the (8,128) block rule
        if tm <= target_rows:
            best = s                     # largest valid tile <= target
        elif best is None:
            best = s                     # smallest valid tile above target
            break
    return best if best is not None else B


# ----------------------------- Pallas kernel -----------------------------

def _embeddings_kernel(x_ref, w_ref, b_ref, pos_ref, g_ref, beta_ref, o_ref,
                       *, emb_norm, eps, h_logical, seqs_per_tile, masked):
    # x_ref: [tm, Fin]   w_ref: [Fin, Hp]   b/g/beta: [1, Hp]   pos: [T, Hp]
    x = x_ref[...]
    # Linear(feature_num -> hidden): single MXU matmul, f32 accumulation.
    e = jnp.dot(x, w_ref[...], preferred_element_type=jnp.float32) + b_ref[...]

    gamma = g_ref[...]
    beta = beta_ref[...]

    if masked:
        # Hidden axis is zero-padded to Hp lanes: compute LN statistics over
        # the logical H only so padded lanes never affect mean/variance.
        hp = e.shape[-1]
        lane = jax.lax.broadcasted_iota(jnp.int32, (1, hp), 1)
        mask = (lane < h_logical).astype(jnp.float32)
        inv_h = 1.0 / float(h_logical)

        def ln(v):
            u = jnp.sum(v * mask, axis=-1, keepdims=True) * inv_h
            d = (v - u) * mask
            s = jnp.sum(d * d, axis=-1, keepdims=True) * inv_h
            return d * jax.lax.rsqrt(s + eps) * gamma + beta
    else:
        def ln(v):
            u = jnp.mean(v, axis=-1, keepdims=True)
            d = v - u
            s = jnp.mean(d * d, axis=-1, keepdims=True)
            return d * jax.lax.rsqrt(s + eps) * gamma + beta

    if emb_norm:                                           # compile-time flag
        e = ln(e)

    # pos = arange(T) lookup == first T rows of the embedding table; broadcast
    # it over the seqs_per_tile sequences folded into this row tile.
    pos = pos_ref[...]
    if seqs_per_tile > 1:
        pos = jnp.tile(pos, (seqs_per_tile, 1))
    o_ref[...] = ln(e + pos)


# ----------------------------- wrapper -----------------------------

def embeddings_forward(x, params, *, emb_norm=True, eps=1e-12,
                       compute_dtype=None, target_rows_per_tile=256):
    """x: [B, T, feature_num] -> [B, T, hidden] (matches Embeddings.forward)."""
    B, T, Fin = x.shape
    H = params['lin_w'].shape[1]
    Hp = _round_up(H, 128)                       # lane-dense hidden axis
    pad = Hp - H

    lin_w = params['lin_w']                      # [Fin, H]
    lin_b = params['lin_b'].reshape(1, H)
    pos_w = params['pos_w'][:T]                  # pos_embed(arange(T)) rows
    ln_g = params['ln_g'].reshape(1, H)
    ln_b = params['ln_b'].reshape(1, H)

    if pad:
        lin_w = jnp.pad(lin_w, ((0, 0), (0, pad)))
        lin_b = jnp.pad(lin_b, ((0, 0), (0, pad)))
        pos_w = jnp.pad(pos_w, ((0, 0), (0, pad)))
        ln_g = jnp.pad(ln_g, ((0, 0), (0, pad)))
        ln_b = jnp.pad(ln_b, ((0, 0), (0, pad)))

    rows = B * T
    x2 = x.reshape(rows, Fin)                    # fold batch+seq into rows
    if compute_dtype is not None:                # e.g. bf16 MXU operands on v6e/v7x
        x2 = x2.astype(compute_dtype)
        lin_w = lin_w.astype(compute_dtype)

    seqs = _choose_seqs_per_tile(B, T, target_rows_per_tile)
    tm = seqs * T
    grid = (rows // tm,)

    kernel = functools.partial(
        _embeddings_kernel, emb_norm=emb_norm, eps=float(eps),
        h_logical=H, seqs_per_tile=seqs, masked=(pad > 0))

    itemsize_x = jnp.dtype(x2.dtype).itemsize
    itemsize_w = jnp.dtype(lin_w.dtype).itemsize
    cost = pl.CostEstimate(
        flops=2 * rows * Fin * Hp + 10 * rows * Hp,
        transcendentals=2 * rows,
        bytes_accessed=(rows * Fin * itemsize_x + Fin * Hp * itemsize_w
                        + T * Hp * 4 + rows * Hp * 4),
    )

    out = pl.pallas_call(
        kernel,
        out_shape=jax.ShapeDtypeStruct((rows, Hp), jnp.float32),
        grid=grid,
        in_specs=[
            pl.BlockSpec((tm, Fin), lambda i: (i, 0)),     # activations (tiled rows)
            pl.BlockSpec((Fin, Hp), lambda i: (0, 0)),     # linear weight (invariant)
            pl.BlockSpec((1, Hp), lambda i: (0, 0)),       # linear bias (invariant)
            pl.BlockSpec((T, Hp), lambda i: (0, 0)),       # pos table rows (invariant)
            pl.BlockSpec((1, Hp), lambda i: (0, 0)),       # LN gamma (invariant)
            pl.BlockSpec((1, Hp), lambda i: (0, 0)),       # LN beta (invariant)
        ],
        out_specs=pl.BlockSpec((tm, Hp), lambda i: (i, 0)),
        compiler_params=pltpu.CompilerParams(
            dimension_semantics=("parallel",),             # row tiles are independent
        ),
        cost_estimate=cost,
    )(x2, lin_w, lin_b, pos_w, ln_g, ln_b)

    out = out.reshape(B, T, Hp)
    if pad:
        out = out[:, :, :H]                                # drop lane padding
    return out


# ----------------------------- parameters -----------------------------

def init_params(key, feature_num, hidden, seq_len):
    k_w, k_b, k_pos = jax.random.split(key, 3)
    scale = 1.0 / jnp.sqrt(jnp.float32(feature_num))
    return {
        # nn.Linear(feature_num, hidden): weight stored pre-transposed [Fin, H]
        'lin_w': scale * jax.random.normal(k_w, (feature_num, hidden), jnp.float32),
        'lin_b': 0.01 * jax.random.normal(k_b, (hidden,), jnp.float32),
        # nn.Embedding(seq_len, hidden)
        'pos_w': jax.random.normal(k_pos, (seq_len, hidden), jnp.float32),
        # LayerNorm(hidden) — ONE instance, applied twice (matches the module)
        'ln_g': jnp.ones((hidden,), jnp.float32),
        'ln_b': jnp.zeros((hidden,), jnp.float32),
    }


# ----------------------------- main -----------------------------

if __name__ == "__main__":
    B, T, Fin, H = 2, 8, 16, 32        # batch, seq_len, feature_num, hidden
    EMB_NORM = True
    EPS = 1e-12

    key = jax.random.PRNGKey(0)
    k_x, k_p = jax.random.split(key)
    x = jax.random.normal(k_x, (B, T, Fin), dtype=jnp.float32)
    params = init_params(k_p, feature_num=Fin, hidden=H, seq_len=T)

    y = embeddings_forward(x, params, emb_norm=EMB_NORM, eps=EPS)
    y = jax.block_until_ready(y)

    # Pure-JAX reference (mirrors the PyTorch forward exactly).
    def reference(x, p):
        e = x @ p['lin_w'] + p['lin_b']

        def ln(v):
            u = v.mean(-1, keepdims=True)
            s = ((v - u) ** 2).mean(-1, keepdims=True)
            return p['ln_g'] * ((v - u) / jnp.sqrt(s + EPS)) + p['ln_b']

        if EMB_NORM:
            e = ln(e)
        e = e + p['pos_w'][None, :T, :]
        return ln(e)

    y_ref = reference(x, params)

    assert y.shape == (B, T, H), y.shape
    assert bool(jnp.all(jnp.isfinite(y)))
    assert bool(jnp.allclose(y, y_ref, atol=1e-4, rtol=1e-4)), float(
        jnp.max(jnp.abs(y - y_ref)))
    print("KERNEL_OK")
</pallas_src>

<mosaic_0001>
module attributes {stable_mosaic.version = 11 : i64} {
  func.func @_embeddings_kernel(%arg0: i32, %arg1: memref<16x16xf32, #tpu.memory_space<vmem>>, %arg2: memref<16x128xf32, #tpu.memory_space<vmem>>, %arg3: memref<1x128xf32, #tpu.memory_space<vmem>>, %arg4: memref<8x128xf32, #tpu.memory_space<vmem>>, %arg5: memref<1x128xf32, #tpu.memory_space<vmem>>, %arg6: memref<1x128xf32, #tpu.memory_space<vmem>>, %arg7: memref<16x128xf32, #tpu.memory_space<vmem>>) attributes {dimension_semantics = [#tpu.dimension_semantics<parallel>], iteration_bounds = array<i64: 1>, scalar_prefetch = 0 : i64, scratch_operands = 0 : i64, tpu.core_type = #tpu.core_type<tc>, window_params = [{transform_indices = @transform_0, window_bounds = array<i64: 16, 16>}, {pipeline_mode = #tpu.pipeline_mode<synchronous>, transform_indices = @transform_1, window_bounds = array<i64: 16, 128>}, {pipeline_mode = #tpu.pipeline_mode<synchronous>, transform_indices = @transform_2, window_bounds = array<i64: 1, 128>}, {pipeline_mode = #tpu.pipeline_mode<synchronous>, transform_indices = @transform_3, window_bounds = array<i64: 8, 128>}, {pipeline_mode = #tpu.pipeline_mode<synchronous>, transform_indices = @transform_4, window_bounds = array<i64: 1, 128>}, {pipeline_mode = #tpu.pipeline_mode<synchronous>, transform_indices = @transform_5, window_bounds = array<i64: 1, 128>}, {transform_indices = @transform_6, window_bounds = array<i64: 16, 128>}]} {
    %c0 = arith.constant 0 : index
    %c0_0 = arith.constant 0 : index
    %0 = vector.load %arg1[%c0, %c0_0] : memref<16x16xf32, #tpu.memory_space<vmem>>, vector<16x16xf32>
    %c0_1 = arith.constant 0 : index
    %c0_2 = arith.constant 0 : index
    %1 = vector.load %arg2[%c0_1, %c0_2] : memref<16x128xf32, #tpu.memory_space<vmem>>, vector<16x128xf32>
    %cst = arith.constant dense<0.000000e+00> : vector<16x128xf32>
    %2 = tpu.matmul %0, %1, %cst {dimension_numbers = #tpu.dot_dimension_numbers<[1], [0], [0], [1], [0, 0, 1, 1], [], []>} : vector<16x16xf32>, vector<16x128xf32>, vector<16x128xf32> -> vector<16x128xf32>
    %c0_3 = arith.constant 0 : index
    %c0_4 = arith.constant 0 : index
    %3 = vector.load %arg3[%c0_3, %c0_4] : memref<1x128xf32, #tpu.memory_space<vmem>>, vector<1x128xf32>
    %4 = vector.broadcast %3 : vector<1x128xf32> to vector<16x128xf32>
    %5 = arith.addf %2, %4 : vector<16x128xf32>
    %c0_5 = arith.constant 0 : index
    %c0_6 = arith.constant 0 : index
    %6 = vector.load %arg5[%c0_5, %c0_6] : memref<1x128xf32, #tpu.memory_space<vmem>>, vector<1x128xf32>
    %c0_7 = arith.constant 0 : index
    %c0_8 = arith.constant 0 : index
    %7 = vector.load %arg6[%c0_7, %c0_8] : memref<1x128xf32, #tpu.memory_space<vmem>>, vector<1x128xf32>
    %8 = tpu.iota {dimensions = array<i32: 1>} : vector<1x128xi32>
    %c32_i32 = arith.constant 32 : i32
    %9 = vector.broadcast %c32_i32 : i32 to vector<1x128xi32>
    %10 = arith.cmpi slt, %8, %9 : vector<1x128xi32>
    %11 = arith.extui %10 : vector<1x128xi1> to vector<1x128xi32>
    %12 = arith.sitofp %11 : vector<1x128xi32> to vector<1x128xf32>
    %13 = vector.broadcast %12 : vector<1x128xf32> to vector<16x128xf32>
    %14 = arith.mulf %5, %13 : vector<16x128xf32>
    %cst_9 = arith.constant dense<0.000000e+00> : vector<16xf32>
    %15 = vector.multi_reduction <add>, %14, %cst_9 [1] : vector<16x128xf32> to vector<16xf32>
    %16 = vector.shape_cast %15 : vector<16xf32> to vector<16x1xf32>
    %cst_10 = arith.constant 3.125000e-02 : f32
    %17 = vector.broadcast %cst_10 : f32 to vector<16x1xf32>
    %18 = arith.mulf %16, %17 : vector<16x1xf32>
    %19 = vector.broadcast %18 : vector<16x1xf32> to vector<16x128xf32>
    %20 = arith.subf %5, %19 : vector<16x128xf32>
    %21 = vector.broadcast %12 : vector<1x128xf32> to vector<16x128xf32>
    %22 = arith.mulf %20, %21 : vector<16x128xf32>
    %23 = arith.mulf %22, %22 : vector<16x128xf32>
    %cst_11 = arith.constant dense<0.000000e+00> : vector<16xf32>
    %24 = vector.multi_reduction <add>, %23, %cst_11 [1] : vector<16x128xf32> to vector<16xf32>
    %25 = vector.shape_cast %24 : vector<16xf32> to vector<16x1xf32>
    %cst_12 = arith.constant 3.125000e-02 : f32
    %26 = vector.broadcast %cst_12 : f32 to vector<16x1xf32>
    %27 = arith.mulf %25, %26 : vector<16x1xf32>
    %cst_13 = arith.constant 9.99999996E-13 : f32
    %28 = vector.broadcast %cst_13 : f32 to vector<16x1xf32>
    %29 = arith.addf %27, %28 : vector<16x1xf32>
    %30 = math.rsqrt %29 : vector<16x1xf32>
    %31 = vector.broadcast %30 : vector<16x1xf32> to vector<16x128xf32>
    %32 = arith.mulf %22, %31 : vector<16x128xf32>
    %33 = vector.broadcast %6 : vector<1x128xf32> to vector<16x128xf32>
    %34 = arith.mulf %32, %33 : vector<16x128xf32>
    %35 = vector.broadcast %7 : vector<1x128xf32> to vector<16x128xf32>
    %36 = arith.addf %34, %35 : vector<16x128xf32>
    %c0_14 = arith.constant 0 : index
    %c0_15 = arith.constant 0 : index
    %37 = vector.load %arg4[%c0_14, %c0_15] : memref<8x128xf32, #tpu.memory_space<vmem>>, vector<8x128xf32>
    %38 = tpu.concatenate %37, %37 in 0 : vector<8x128xf32>, vector<8x128xf32> -> vector<16x128xf32>
    %39 = arith.addf %36, %38 : vector<16x128xf32>
    %40 = vector.broadcast %12 : vector<1x128xf32> to vector<16x128xf32>
    %41 = arith.mulf %39, %40 : vector<16x128xf32>
    %cst_16 = arith.constant dense<0.000000e+00> : vector<16xf32>
    %42 = vector.multi_reduction <add>, %41, %cst_16 [1] : vector<16x128xf32> to vector<16xf32>
    %43 = vector.shape_cast %42 : vector<16xf32> to vector<16x1xf32>
    %cst_17 = arith.constant 3.125000e-02 : f32
    %44 = vector.broadcast %cst_17 : f32 to vector<16x1xf32>
    %45 = arith.mulf %43, %44 : vector<16x1xf32>
    %46 = vector.broadcast %45 : vector<16x1xf32> to vector<16x128xf32>
    %47 = arith.subf %39, %46 : vector<16x128xf32>
    %48 = vector.broadcast %12 : vector<1x128xf32> to vector<16x128xf32>
    %49 = arith.mulf %47, %48 : vector<16x128xf32>
    %50 = arith.mulf %49, %49 : vector<16x128xf32>
    %cst_18 = arith.constant dense<0.000000e+00> : vector<16xf32>
    %51 = vector.multi_reduction <add>, %50, %cst_18 [1] : vector<16x128xf32> to vector<16xf32>
    %52 = vector.shape_cast %51 : vector<16xf32> to vector<16x1xf32>
    %cst_19 = arith.constant 3.125000e-02 : f32
    %53 = vector.broadcast %cst_19 : f32 to vector<16x1xf32>
    %54 = arith.mulf %52, %53 : vector<16x1xf32>
    %cst_20 = arith.constant 9.99999996E-13 : f32
    %55 = vector.broadcast %cst_20 : f32 to vector<16x1xf32>
    %56 = arith.addf %54, %55 : vector<16x1xf32>
    %57 = math.rsqrt %56 : vector<16x1xf32>
    %58 = vector.broadcast %57 : vector<16x1xf32> to vector<16x128xf32>
    %59 = arith.mulf %49, %58 : vector<16x128xf32>
    %60 = vector.broadcast %6 : vector<1x128xf32> to vector<16x128xf32>
    %61 = arith.mulf %59, %60 : vector<16x128xf32>
    %62 = vector.broadcast %7 : vector<1x128xf32> to vector<16x128xf32>
    %63 = arith.addf %61, %62 : vector<16x128xf32>
    %c0_21 = arith.constant 0 : index
    %c0_22 = arith.constant 0 : index
    %64 = vector.load %arg7[%c0_21, %c0_22] : memref<16x128xf32, #tpu.memory_space<vmem>>, vector<16x128xf32>
    tpu.vector_store %arg7[%c0_21, %c0_22], %63 {strides = array<i32>} : memref<16x128xf32, #tpu.memory_space<vmem>>, vector<16x128xf32>,
    return
  }
  func.func @transform_0(%arg0: i32) -> (i32, i32) {
    %c0_i32 = arith.constant 0 : i32
    %c0_i32_0 = arith.constant 0 : i32
    return %arg0, %c0_i32 : i32, i32
  }
  func.func @transform_1(%arg0: i32) -> (i32, i32) {
    %c0_i32 = arith.constant 0 : i32
    %c0_i32_0 = arith.constant 0 : i32
    %c0_i32_1 = arith.constant 0 : i32
    return %c0_i32, %c0_i32_0 : i32, i32
  }
  func.func @transform_2(%arg0: i32) -> (i32, i32) {
    %c0_i32 = arith.constant 0 : i32
    %c0_i32_0 = arith.constant 0 : i32
    %c0_i32_1 = arith.constant 0 : i32
    return %c0_i32, %c0_i32_0 : i32, i32
  }
  func.func @transform_3(%arg0: i32) -> (i32, i32) {
    %c0_i32 = arith.constant 0 : i32
    %c0_i32_0 = arith.constant 0 : i32
    %c0_i32_1 = arith.constant 0 : i32
    return %c0_i32, %c0_i32_0 : i32, i32
  }
  func.func @transform_4(%arg0: i32) -> (i32, i32) {
    %c0_i32 = arith.constant 0 : i32
    %c0_i32_0 = arith.constant 0 : i32
    %c0_i32_1 = arith.constant 0 : i32
    return %c0_i32, %c0_i32_0 : i32, i32
  }
  func.func @transform_5(%arg0: i32) -> (i32, i32) {
    %c0_i32 = arith.constant 0 : i32
    %c0_i32_0 = arith.constant 0 : i32
    %c0_i32_1 = arith.constant 0 : i32
    return %c0_i32, %c0_i32_0 : i32, i32
  }
  func.func @transform_6(%arg0: i32) -> (i32, i32) {
    %c0_i32 = arith.constant 0 : i32
    %c0_i32_0 = arith.constant 0 : i32
    return %arg0, %c0_i32 : i32, i32
  }
}

</mosaic_0001>

<llo_original>
// kernel: tpu_custom_call.1
$region0: #{tpu_custom_call.1}
  #allocation0 [shape = 'u32[]', space=smem, size = 0x4, offset = 0x4, fixed_abs, tag = 'smem constant byte address 0x4 - core index']
  #allocation1 [shape = 'u32[144,128]{1,0:T(1,128)}', space=vmem, size = 0x12000, scoped, tag = 'internal scratch']
  %s0 = inlined_call_operand.hbm [shape: f32[16,16], index: 0, kind: input, shape index: {}]
  %s1 = inlined_call_operand.hbm [shape: f32[16,128], index: 1, kind: input, shape index: {}]
  %s2 = inlined_call_operand.vmem [shape: f32[1,128], index: 2, kind: input, shape index: {}]
  %s3 = inlined_call_operand.hbm [shape: f32[8,128], index: 3, kind: input, shape index: {}]
  %s4 = inlined_call_operand.vmem [shape: f32[1,128], index: 4, kind: input, shape index: {}]
  %s5 = inlined_call_operand.vmem [shape: f32[1,128], index: 5, kind: input, shape index: {}]
  %s6 = inlined_call_operand.hbm [shape: f32[16,128], index: 6, kind: output, shape index: {}]
  %s7 = sld [smem:[#allocation0]]
  $region46: #{tpu_custom_call.1} parent=0
    _
  %s9 = ssub.s32 1, %s7
  %s10 = scalar_select 0, %s9, %s7
  $region1: #{tpu_custom_call.1} parent=0
    #allocation2 [shape = 'u8[8192]{0}', space=vmem, size = 0x2000, scoped, tag = 'input window, operand 0, single buffered']
    #allocation3 [shape = 's32[1]{0}', space=sflag, size = 0x4, scoped, tag = 'scoped memory for tpu_custom_call.1']
    #allocation4 [shape = 's32[1]{0}', space=sflag, size = 0x4, scoped, tag = 'scoped memory for tpu_custom_call.1']
    #allocation5 [shape = 'u8[8192]{0}', space=vmem, size = 0x2000, scoped, tag = 'input window, operand 1, single buffered']
    #allocation6 [shape = 's32[1]{0}', space=sflag, size = 0x4, scoped, tag = 'scoped memory for tpu_custom_call.1']
    #allocation7 [shape = 'u8[4096]{0}', space=vmem, size = 0x1000, scoped, tag = 'input window, operand 3, single buffered']
    #allocation8 [shape = 'u8[8192]{0}', space=vmem, size = 0x2000, scoped, tag = 'output window, operand 0, single buffered']
    %11 = vsyncpa [#allocation3], 0
    %12 = vsyncpa [#allocation6], 0
    %13 = vsyncpa [#allocation4], 0
    // Predicated region
    $region2: #{tpu_custom_call.1} parent=1 // pred_check
      _
    $region3: #{tpu_custom_call.1} parent=1 // pred_check_branch
      %15 = sbr.rel (0) target = $region5
    $region4: #{tpu_custom_call.1} parent=1 // pred_region
      %s17 = ssub.s32 256, 256
      %18 = vsyncadd [#allocation3], %s17
      %s19 = sshll.u32 [#allocation2], 4
      %s20 = int_to_ptr.vmem [resolvable:$true] %s19
      %25 = dma.hbm_to_vmem [thread:$0]  %s0, 256, %s20, [#allocation3], 128, 128, 8
    $region5: #{tpu_custom_call.1} parent=1 // pred_fallthru
      _
    // Predicated region
    $region6: #{tpu_custom_call.1} parent=1 // pred_check
      _
    $region7: #{tpu_custom_call.1} parent=1 // pred_check_branch
      %27 = sbr.rel (0) target = $region9
    $region8: #{tpu_custom_call.1} parent=1 // pred_region
      %s29 = ssub.s32 256, 256
      %30 = vsyncadd [#allocation6], %s29
      %s31 = sshll.u32 [#allocation5], 4
      %s32 = int_to_ptr.vmem [resolvable:$true] %s31
      %37 = dma.hbm_to_vmem [thread:$0]  %s1, 256, %s32, [#allocation6], 128, 128, 8
    $region9: #{tpu_custom_call.1} parent=1 // pred_fallthru
      _
    // Predicated region
    $region10: #{tpu_custom_call.1} parent=1 // pred_check
      _
    $region11: #{tpu_custom_call.1} parent=1 // pred_check_branch
      %39 = sbr.rel (0) target = $region13
    $region12: #{tpu_custom_call.1} parent=1 // pred_region
      _
    $region13: #{tpu_custom_call.1} parent=1 // pred_fallthru
      _
    // Predicated region
    $region14: #{tpu_custom_call.1} parent=1 // pred_check
      _
    $region15: #{tpu_custom_call.1} parent=1 // pred_check_branch
      %41 = sbr.rel (0) target = $region17
    $region16: #{tpu_custom_call.1} parent=1 // pred_region
      %s43 = ssub.s32 128, 128
      %44 = vsyncadd [#allocation6], %s43
      %s46 = sshll.u32 [#allocation7], 4
      %s47 = int_to_ptr.vmem [resolvable:$true] %s46
      %49 = dma.hbm_to_vmem [thread:$0]  %s3, 128, %s47, [#allocation6]
    $region17: #{tpu_custom_call.1} parent=1 // pred_fallthru
      _
    // Predicated region
    $region18: #{tpu_custom_call.1} parent=1 // pred_check
      _
    $region19: #{tpu_custom_call.1} parent=1 // pred_check_branch
      %51 = sbr.rel (0) target = $region21
    $region20: #{tpu_custom_call.1} parent=1 // pred_region
      _
    $region21: #{tpu_custom_call.1} parent=1 // pred_fallthru
      _
    // Predicated region
    $region22: #{tpu_custom_call.1} parent=1 // pred_check
      _
    $region23: #{tpu_custom_call.1} parent=1 // pred_check_branch
      %53 = sbr.rel (0) target = $region25
    $region24: #{tpu_custom_call.1} parent=1 // pred_region
      _
    $region25: #{tpu_custom_call.1} parent=1 // pred_fallthru
      _
    // Predicated region
    $region26: #{tpu_custom_call.1} parent=1 // pred_check
      _
    $region27: #{tpu_custom_call.1} parent=1 // pred_check_branch
      %55 = sbr.rel (0) target = $region29
    $region28: #{tpu_custom_call.1} parent=1 // pred_region
      %56 = dma.done [#allocation3], 256
    $region29: #{tpu_custom_call.1} parent=1 // pred_fallthru
      _
    // Predicated region
    $region30: #{tpu_custom_call.1} parent=1 // pred_check
      _
    $region31: #{tpu_custom_call.1} parent=1 // pred_check_branch
      %58 = sbr.rel (0) target = $region33
    $region32: #{tpu_custom_call.1} parent=1 // pred_region
      %59 = dma.done [#allocation6], 256
    $region33: #{tpu_custom_call.1} parent=1 // pred_fallthru
      _
    // Predicated region
    $region34: #{tpu_custom_call.1} parent=1 // pred_check
      _
    $region35: #{tpu_custom_call.1} parent=1 // pred_check_branch
      %61 = sbr.rel (0) target = $region37
    $region36: #{tpu_custom_call.1} parent=1 // pred_region
      %62 = dma.done [#allocation6], 128
    $region37: #{tpu_custom_call.1} parent=1 // pred_fallthru
      _
    %v63 = vld [vmem:[#allocation2] sm:$0xff]
    %v64 = vld [vmem:[#allocation2 + $0x8] sm:$0xff]
    %v65 = vld [vmem:[#allocation5] sm:$0xff]
    %v66 = vld [vmem:[#allocation5 + $0x8] sm:$0xff]
    %v67 = vld [vmem:[%s2] sm:$0x1]
    %v69 = vlaneseq
    %v70 = vshrl.u32 %v69, 7
    %v71 = vsub.s32 0, %v70
    %v72 = vrot.slane %v67, %v71
    %vm74 = vcmask 130048
    %v76 = vsel %vm74, %v63, 0
    %v79 = vsel %vm74, %v64, 0
    %81 = vmatprep.subr.mxu0 0.0
    %82 = vmatpush1.msra.mxu0 0.0
    %83 = vmatprep.subr.mxu0 0.0
    %84 = vmatpush1.msra.mxu0 0.0
    %85 = vmatprep.subr.mxu0 0.0
    %86 = vmatpush1.msra.mxu0 0.0
    %87 = vmatprep.subr.mxu0 0.0
    %88 = vmatpush1.msra.mxu0 0.0
    %89 = vmatprep.subr.mxu0 0.0
    %90 = vmatpush1.msra.mxu0 0.0
    %91 = vmatprep.subr.mxu0 0.0
    %92 = vmatpush1.msra.mxu0 0.0
    %93 = vmatprep.subr.mxu0 0.0
    %94 = vmatpush1.msra.mxu0 0.0
    %95 = vmatprep.subr.mxu0 0.0
    %96 = vmatpush1.msra.mxu0 0.0
    %97 = vmatprep.subr.mxu0 0.0
    %98 = vmatpush1.msra.mxu0 0.0
    %99 = vmatprep.subr.mxu0 0.0
    %100 = vmatpush1.msra.mxu0 0.0
    %101 = vmatprep.subr.mxu0 0.0
    %102 = vmatpush1.msra.mxu0 0.0
    %103 = vmatprep.subr.mxu0 0.0
    %104 = vmatpush1.msra.mxu0 0.0
    %105 = vmatprep.subr.mxu0 0.0
    %106 = vmatpush1.msra.mxu0 0.0
    %107 = vmatprep.subr.mxu0 0.0
    %108 = vmatpush1.msra.mxu0 0.0
    %109 = vmatprep.subr.mxu0 0.0
    %110 = vmatpush1.msra.mxu0 %v66
    %111 = vmatprep.subr.mxu0 0.0
    %112 = vmatpush1.msra.mxu0 %v65
    %113 = vmatprep.subr.mxu0 0.0
    %114 = vmatpush2.msra.mxu0 0.0
    %115 = vmatprep.subr.mxu0 0.0
    %116 = vmatpush2.msra.mxu0 0.0
    %117 = vmatprep.subr.mxu0 0.0
    %118 = vmatpush2.msra.mxu0 0.0
    %119 = vmatprep.subr.mxu0 0.0
    %120 = vmatpush2.msra.mxu0 0.0
    %121 = vmatprep.subr.mxu0 0.0
    %122 = vmatpush2.msra.mxu0 0.0
    %123 = vmatprep.subr.mxu0 0.0
    %124 = vmatpush2.msra.mxu0 0.0
    %125 = vmatprep.subr.mxu0 0.0
    %126 = vmatpush2.msra.mxu0 0.0
    %127 = vmatprep.subr.mxu0 0.0
    %128 = vmatpush2.msra.mxu0 0.0
    %129 = vmatprep.subr.mxu0 0.0
    %130 = vmatpush2.msra.mxu0 0.0
    %131 = vmatprep.subr.mxu0 0.0
    %132 = vmatpush2.msra.mxu0 0.0
    %133 = vmatprep.subr.mxu0 0.0
    %134 = vmatpush2.msra.mxu0 0.0
    %135 = vmatprep.subr.mxu0 0.0
    %136 = vmatpush2.msra.mxu0 0.0
    %137 = vmatprep.subr.mxu0 0.0
    %138 = vmatpush2.msra.mxu0 0.0
    %139 = vmatprep.subr.mxu0 0.0
    %140 = vmatpush2.msra.mxu0 0.0
    %141 = vmatprep.subr.mxu0 0.0
    %142 = vmatpush2.msra.mxu0 0.0
    %143 = vmatprep.subr.mxu0 0.0
    %144 = vmatpush2.msra.mxu0 0.0
    %145 = vmatprep.mubr.f32.mxu0 0.0
    %146 = vmatmul.mubr.f32.gmra.mxu0 %v76
    %v147 = vpop.f32.mrf.mxu0
    %v148 = vadd.f32 %v72, %v147
    %v149 = vpop.f32.mrf.mxu0
    %150 = vmatprep.mubr.f32.mxu0 0.0
    %151 = vmatmul.mubr.f32.gmra.mxu0 %v79
    %v152 = vpop.f32.mrf.mxu0
    %v153 = vadd.f32 %v72, %v152
    %v154 = vpop.f32.mrf.mxu0
    %155 = vdwg.mxu0
    %v156 = vld [vmem:[%s4] sm:$0x1]
    %v157 = vld [vmem:[%s5] sm:$0x1]
    %v158 = vlaneseq
    %v159 = vand.u32 %v158, 127
    %vm160 = vcmp.lt.s32.totalorder %v159, 32
    %v161 = vsel %vm160, 1, 0
    %v162 = vcvt.s32.f32 %v161
    %v163 = vmul.f32 %v148, %v162
    %v164 = vmul.f32 %v153, %v162
    %165 = vadd.xlane.f32.xlu0 %v163
    %v166 = vpop.xlane.xlu0 %165
    %167 = vadd.xlane.f32.xlu0 %v164
    %v168 = vpop.xlane.xlu0 %167
    %v169 = vmul.f32 %v166, 0.03125
    %v170 = vmul.f32 %v168, 0.03125
    %v171 = vsub.f32 %v148, %v169
    %v172 = vsub.f32 %v153, %v170
    %v173 = vmul.f32 %v171, %v162
    %v174 = vmul.f32 %v172, %v162
    %v175 = vmul.f32 %v173, %v173
    %v176 = vmul.f32 %v174, %v174
    %177 = vadd.xlane.f32.xlu0 %v175
    %v178 = vpop.xlane.xlu0 %177
    %179 = vadd.xlane.f32.xlu0 %v176
    %v180 = vpop.xlane.xlu0 %179
    %v181 = vmul.f32 %v178, 0.03125
    %v182 = vmul.f32 %v180, 0.03125
    %v183 = vadd.f32 %v181, 1e-12
    %v184 = vadd.f32 %v182, 1e-12
    %v185 = vrsqrt.pop %v183
    %v186 = vrsqrt.pop %v184
    %v187 = vmul.f32 %v173, %v185
    %v188 = vmul.f32 %v174, %v186
    %v190 = vlaneseq
    %v191 = vshrl.u32 %v190, 7
    %v192 = vsub.s32 0, %v191
    %v193 = vrot.slane %v156, %v192
    %v195 = vmul.f32 %v187, %v193
    %v196 = vmul.f32 %v188, %v193
    %v198 = vlaneseq
    %v199 = vshrl.u32 %v198, 7
    %v200 = vsub.s32 0, %v199
    %v201 = vrot.slane %v157, %v200
    %v203 = vadd.f32 %v195, %v201
    %v204 = vadd.f32 %v196, %v201
    %v205 = vld [vmem:[#allocation7] sm:$0xff]
    %v206 = vadd.f32 %v203, %v205
    %v207 = vadd.f32 %v204, %v205
    %v208 = vmul.f32 %v206, %v162
    %v209 = vmul.f32 %v207, %v162
    %210 = vadd.xlane.f32.xlu0 %v208
    %v211 = vpop.xlane.xlu0 %210
    %212 = vadd.xlane.f32.xlu0 %v209
    %v213 = vpop.xlane.xlu0 %212
    %v214 = vmul.f32 %v211, 0.03125
    %v215 = vmul.f32 %v213, 0.03125
    %v216 = vsub.f32 %v206, %v214
    %v217 = vsub.f32 %v207, %v215
    %v218 = vmul.f32 %v216, %v162
    %v219 = vmul.f32 %v217, %v162
    %v220 = vmul.f32 %v218, %v218
    %v221 = vmul.f32 %v219, %v219
    %222 = vadd.xlane.f32.xlu0 %v220
    %v223 = vpop.xlane.xlu0 %222
    %224 = vadd.xlane.f32.xlu0 %v221
    %v225 = vpop.xlane.xlu0 %224
    %v226 = vmul.f32 %v223, 0.03125
    %v227 = vmul.f32 %v225, 0.03125
    %v228 = vadd.f32 %v226, 1e-12
    %v229 = vadd.f32 %v227, 1e-12
    %v230 = vrsqrt.pop %v228
    %v231 = vrsqrt.pop %v229
    %v232 = vmul.f32 %v218, %v230
    %v233 = vmul.f32 %v219, %v231
    %v234 = vmul.f32 %v232, %v193
    %v235 = vmul.f32 %v233, %v193
    %v236 = vadd.f32 %v234, %v201
    %v237 = vadd.f32 %v235, %v201
    %238 = vst [vmem:[#allocation8] sm:$0xff] %v236
    %239 = vst [vmem:[#allocation8 + $0x8] sm:$0xff] %v237
    // Predicated region
    $region38: #{tpu_custom_call.1} parent=1 // pred_check
      _
    $region39: #{tpu_custom_call.1} parent=1 // pred_check_branch
      %241 = sbr.rel (0) target = $region41
    $region40: #{tpu_custom_call.1} parent=1 // pred_region
      %s243 = ssub.s32 256, 256
      %244 = vsyncadd [#allocation4], %s243
      %s245 = sshll.u32 [#allocation8], 4
      %s246 = int_to_ptr.vmem [resolvable:$true] %s245
      %251 = dma.vmem_to_hbm [thread:$0]  %s246, 256, %s6, [#allocation4], 128, 128, 8
    $region41: #{tpu_custom_call.1} parent=1 // pred_fallthru
      _
    // Predicated region
    $region42: #{tpu_custom_call.1} parent=1 // pred_check
      _
    $region43: #{tpu_custom_call.1} parent=1 // pred_check_branch
      %253 = sbr.rel (0) target = $region45
    $region44: #{tpu_custom_call.1} parent=1 // pred_region
      %254 = dma.done [#allocation4], 256
    $region45: #{tpu_custom_call.1} parent=1 // pred_fallthru
      _
    %255 = vsyncpa [#allocation3], 1
    %256 = vsyncpa [#allocation6], 1
    %257 = vsyncpa [#allocation4], 1

</llo_original>
